<compile_context>
chip_gen: v6e
topology: v6e:2x2x1
jax: 0.10.0
libtpu: 0.0.40
codegen_flags: <defaults>
</compile_context>

<pallas_src>
import functools

import jax
import jax.numpy as jnp
from jax.experimental import pallas as pl
from jax.experimental.pallas import tpu as pltpu


def _return_norm_kernel(x_ref, out_ref, carry_ref, *, eps, block_t):
    """One (1, block_t, block_c) tile of normalized_x = x / (prev_steps + eps).

    Invariant (do not break): the T grid axis is innermost and 'arbitrary', so
    the T-tiles of one (batch, channel-tile) stream run in order on one core;
    `carry_ref` holds the previous T-tile's last row and is reset at t == 0.
    """
    t = pl.program_id(2)

    x32 = x_ref[0].astype(jnp.float32)            # (block_t, block_c) in f32

    # First T-tile of each (b, c) stream: prev_steps[0] == x[0] (anchor row).
    @pl.when(t == 0)
    def _():
        carry_ref[...] = x32[0:1, :]

    # prev_steps within the tile: shift rows down by one on the XLU, then fold
    # the carried row (previous tile's last row / anchor) into row 0 so there
    # is a single divide and a single full-tile store.
    rolled = pltpu.roll(x32, shift=1, axis=0)
    row_ids = jax.lax.broadcasted_iota(jnp.int32, x32.shape, 0)
    prev = jnp.where(row_ids == 0, carry_ref[...], rolled)

    # Reciprocal on the (otherwise idle) EUP + multiply on the VPU instead of
    # a multi-op Newton divide sequence; approx=False keeps full f32 precision.
    out_ref[0] = (x32 * pl.reciprocal(prev + eps, approx=False)).astype(out_ref.dtype)

    # Carry this tile's last row to the next T-tile (dead on the last tile of
    # each stream, including a padded partial tile).
    carry_ref[...] = x32[block_t - 1:block_t, :]


def _vmem_limit_bytes():
    """Scoped-VMEM limit derived from the actual part (v5e/v6e: 128 MiB,
    v7x: 64 MiB per TensorCore), with headroom for compiler internal scratch."""
    cap = 64 * 1024 * 1024          # conservative default == v7x per-core VMEM
    try:
        info = pltpu.get_tpu_info()
        cap = int(getattr(info, "vmem_capacity_bytes", cap)) or cap
    except Exception:               # interpret mode / unusual setup: stay conservative
        pass
    return min((cap * 3) // 4, 64 * 1024 * 1024)   # v7x -> 48 MiB, v5e/v6e -> 64 MiB


def _pick_tiles(T, C, itemsize, tile_budget_bytes):
    """Largest (block_t, block_c) whose *whole* working set -- double-buffered
    input + double-buffered output + ~3 f32 temporaries (x32, rolled/prev,
    quotient) -- fits the budget, while honoring the (8, 128) BlockSpec
    constraint (multiple of 8 / 128, or the full extent)."""
    bytes_per_elem = 4 * itemsize + 3 * 4          # 2x in + 2x out + 3x f32 temps
    max_elems = max(8 * 128, tile_budget_bytes // bytes_per_elem)

    # Channel tile: keep full C unless even 8 rows of full C blow the budget
    # and C is 128-divisible (lane-dense sub-tiles). C-tiles are independent
    # of the T recurrence, so the C grid axis is safely "parallel".
    if 8 * C <= max_elems or C % 128 != 0:
        block_c = C
    else:
        block_c = min(C, max(128, ((max_elems // 8) // 128) * 128))

    max_rows = max(8, max_elems // block_c)
    if T <= max_rows:
        block_t = T                                # full-extent block (always legal)
    else:
        block_t = max(8, (max_rows // 8) * 8)
    return block_t, block_c


def return_norm_forward(x, eps=1e-8, block_t=None, block_c=None):
    """Pallas implementation of ReturnNorm.forward for x of shape (B, T, C).

    Returns (normalized_x, (anchor,)) with normalized_x = x / (prev_steps + eps)
    and anchor = x[:, 0:1, :].  Compute is done in f32 (eps=1e-8 is below bf16
    resolution) and cast back to x.dtype.
    """
    B, T, C = x.shape
    itemsize = jnp.dtype(x.dtype).itemsize

    vmem_limit = _vmem_limit_bytes()
    auto_t, auto_c = _pick_tiles(T, C, itemsize, tile_budget_bytes=vmem_limit // 2)
    block_t = auto_t if block_t is None else min(block_t, T)
    block_c = auto_c if block_c is None else min(block_c, C)

    # (8, 128) constraint on the trailing two block dims.
    if block_t != T and block_t % 8 != 0:
        raise ValueError(f"block_t={block_t} must be a multiple of 8 or == T={T}")
    if block_c != C and block_c % 128 != 0:
        raise ValueError(f"block_c={block_c} must be a multiple of 128 or == C={C}")

    # cdiv grids: T / C need not be multiples of the tile -- the trailing
    # partial tile is padded on read and masked on writeback; its carry is dead.
    grid = (B, pl.cdiv(C, block_c), pl.cdiv(T, block_t))
    kernel = functools.partial(_return_norm_kernel, eps=eps, block_t=block_t)

    normalized = pl.pallas_call(
        kernel,
        out_shape=jax.ShapeDtypeStruct((B, T, C), x.dtype),
        grid_spec=pltpu.PrefetchScalarGridSpec(
            num_scalar_prefetch=0,
            grid=grid,
            in_specs=[pl.BlockSpec((1, block_t, block_c), lambda b, c, t: (b, t, c))],
            out_specs=pl.BlockSpec((1, block_t, block_c), lambda b, c, t: (b, t, c)),
            scratch_shapes=[pltpu.VMEM((1, block_c), jnp.float32)],
        ),
        compiler_params=pltpu.CompilerParams(
            # B / C-tile streams are independent ("parallel"; candidates for
            # CORE_PARALLEL on v7x); the carried T axis must stay "arbitrary".
            dimension_semantics=("parallel", "parallel", "arbitrary"),
            vmem_limit_bytes=vmem_limit,
        ),
        cost_estimate=pl.CostEstimate(
            flops=3 * B * T * C,                   # add + reciprocal + multiply
            transcendentals=0,
            bytes_accessed=2 * B * T * C * itemsize,
        ),
    )(x)

    # anchor == prev_steps[:, 0:1, :] == x[:, 0:1, :]: pure slice, no kernel work.
    anchor = x[:, 0:1, :]
    return normalized, (anchor,)


def _reference_forward(x, eps=1e-8):
    prev_steps = jnp.concatenate([x[:, 0:1, :], x[:, :-1, :]], axis=1)
    anchor = prev_steps[:, 0:1, :]
    return x / (prev_steps + eps), (anchor,)


if __name__ == "__main__":
    key = jax.random.PRNGKey(0)

    # Primary small-shape check (module's (B, T, C) layout).
    B, T, C = 2, 8, 32
    x = jax.random.uniform(key, (B, T, C), dtype=jnp.float32, minval=0.5, maxval=2.0)

    norm, (anchor,) = return_norm_forward(x)
    jax.block_until_ready(norm)
    jax.block_until_ready(anchor)

    ref_norm, (ref_anchor,) = _reference_forward(x)
    assert norm.shape == (B, T, C) and anchor.shape == (B, 1, C)
    assert jnp.allclose(norm, ref_norm, rtol=1e-6, atol=1e-6)
    assert jnp.allclose(anchor, ref_anchor, rtol=1e-6, atol=1e-6)

    # Carry-across-T-tiles path with lane-dense C.
    x2 = jax.random.uniform(jax.random.PRNGKey(1), (2, 32, 128),
                            dtype=jnp.float32, minval=0.5, maxval=2.0)
    norm2, (anchor2,) = return_norm_forward(x2, block_t=8)
    jax.block_until_ready(norm2)
    ref_norm2, (ref_anchor2,) = _reference_forward(x2)
    assert jnp.allclose(norm2, ref_norm2, rtol=1e-6, atol=1e-6)
    assert jnp.allclose(anchor2, ref_anchor2, rtol=1e-6, atol=1e-6)

    # Awkward T (not a multiple of block_t): partial last tile via the cdiv grid.
    x3 = jax.random.uniform(jax.random.PRNGKey(2), (1, 20, 128),
                            dtype=jnp.float32, minval=0.5, maxval=2.0)
    norm3, _ = return_norm_forward(x3, block_t=8)
    jax.block_until_ready(norm3)
    ref_norm3, _ = _reference_forward(x3)
    assert jnp.allclose(norm3, ref_norm3, rtol=1e-6, atol=1e-6)

    # C-tiled path (block_c < C), exercising the parallel C grid axis.
    x4 = jax.random.uniform(jax.random.PRNGKey(3), (1, 16, 256),
                            dtype=jnp.float32, minval=0.5, maxval=2.0)
    norm4, _ = return_norm_forward(x4, block_t=8, block_c=128)
    jax.block_until_ready(norm4)
    ref_norm4, _ = _reference_forward(x4)
    assert jnp.allclose(norm4, ref_norm4, rtol=1e-6, atol=1e-6)

    print("KERNEL_OK")
</pallas_src>

<mosaic_0001>
module attributes {stable_mosaic.version = 11 : i64} {
  func.func @_return_norm_kernel(%arg0: i32, %arg1: i32, %arg2: i32, %arg3: memref<1x8x32xf32, #tpu.memory_space<vmem>>, %arg4: memref<1x8x32xf32, #tpu.memory_space<vmem>>, %arg5: memref<1x32xf32, #tpu.memory_space<vmem>>) attributes {dimension_semantics = [#tpu.dimension_semantics<parallel>, #tpu.dimension_semantics<parallel>, #tpu.dimension_semantics<arbitrary>], iteration_bounds = array<i64: 2, 1, 1>, scalar_prefetch = 0 : i64, scratch_operands = 1 : i64, tpu.core_type = #tpu.core_type<tc>, window_params = [{transform_indices = @transform_0, window_bounds = array<i64: 1, 8, 32>}, {transform_indices = @transform_1, window_bounds = array<i64: 1, 8, 32>}]} {
    %c0 = arith.constant 0 : index
    %c0_0 = arith.constant 0 : index
    %c0_1 = arith.constant 0 : index
    %0 = vector.load %arg3[%c0, %c0_0, %c0_1] : memref<1x8x32xf32, #tpu.memory_space<vmem>>, vector<1x8x32xf32>
    %1 = vector.shape_cast %0 : vector<1x8x32xf32> to vector<8x32xf32>
    %c0_i32 = arith.constant 0 : i32
    %2 = arith.cmpi eq, %arg2, %c0_i32 : i32
    %3 = arith.extui %2 : i1 to i32
    %c0_i32_2 = arith.constant 0 : i32
    %4 = arith.cmpi ne, %3, %c0_i32_2 : i32
    scf.if %4 {
      %22 = vector.extract_strided_slice %1 {offsets = [0, 0], sizes = [1, 32], strides = [1, 1]} : vector<8x32xf32> to vector<1x32xf32>
      %c0_11 = arith.constant 0 : index
      %c0_12 = arith.constant 0 : index
      %23 = vector.load %arg5[%c0_11, %c0_12] : memref<1x32xf32, #tpu.memory_space<vmem>>, vector<1x32xf32>
      tpu.vector_store %arg5[%c0_11, %c0_12], %22 {strides = array<i32>} : memref<1x32xf32, #tpu.memory_space<vmem>>, vector<1x32xf32>,
    } else {
    }
    %c1_i32 = arith.constant 1 : i32
    %5 = tpu.dynamic_rotate %1 by %c1_i32 dim 0 : vector<8x32xf32>, i32 -> vector<8x32xf32>
    %6 = tpu.iota {dimensions = array<i32: 0>} : vector<8x32xi32>
    %c0_i32_3 = arith.constant 0 : i32
    %7 = vector.broadcast %c0_i32_3 : i32 to vector<8x32xi32>
    %8 = arith.cmpi eq, %6, %7 : vector<8x32xi32>
    %c0_4 = arith.constant 0 : index
    %c0_5 = arith.constant 0 : index
    %9 = vector.load %arg5[%c0_4, %c0_5] : memref<1x32xf32, #tpu.memory_space<vmem>>, vector<1x32xf32>
    %10 = vector.shape_cast %9 : vector<1x32xf32> to vector<1x32xf32>
    %11 = vector.broadcast %10 : vector<1x32xf32> to vector<8x32xf32>
    %12 = arith.select %8, %11, %5 : vector<8x32xi1>, vector<8x32xf32>
    %cst = arith.constant 9.99999993E-9 : f32
    %13 = vector.broadcast %cst : f32 to vector<8x32xf32>
    %14 = arith.addf %12, %13 : vector<8x32xf32>
    %15 = tpu.reciprocal %14 : vector<8x32xf32> -> vector<8x32xf32>
    %16 = arith.mulf %1, %15 : vector<8x32xf32>
    %c0_6 = arith.constant 0 : index
    %c0_7 = arith.constant 0 : index
    %c0_8 = arith.constant 0 : index
    %17 = vector.load %arg4[%c0_6, %c0_7, %c0_8] : memref<1x8x32xf32, #tpu.memory_space<vmem>>, vector<1x8x32xf32>
    %18 = vector.shape_cast %17 : vector<1x8x32xf32> to vector<8x32xf32>
    %19 = vector.shape_cast %16 : vector<8x32xf32> to vector<1x8x32xf32>
    tpu.vector_store %arg4[%c0_6, %c0_7, %c0_8], %19 {strides = array<i32>} : memref<1x8x32xf32, #tpu.memory_space<vmem>>, vector<1x8x32xf32>,
    %20 = vector.extract_strided_slice %1 {offsets = [7, 0], sizes = [1, 32], strides = [1, 1]} : vector<8x32xf32> to vector<1x32xf32>
    %c0_9 = arith.constant 0 : index
    %c0_10 = arith.constant 0 : index
    %21 = vector.load %arg5[%c0_9, %c0_10] : memref<1x32xf32, #tpu.memory_space<vmem>>, vector<1x32xf32>
    tpu.vector_store %arg5[%c0_9, %c0_10], %20 {strides = array<i32>} : memref<1x32xf32, #tpu.memory_space<vmem>>, vector<1x32xf32>,
    return
  }
  func.func @transform_0(%arg0: i32, %arg1: i32, %arg2: i32) -> (i32, i32, i32) {
    %c0_i32 = arith.constant 0 : i32
    return %arg0, %arg2, %arg1 : i32, i32, i32
  }
  func.func @transform_1(%arg0: i32, %arg1: i32, %arg2: i32) -> (i32, i32, i32) {
    %c0_i32 = arith.constant 0 : i32
    return %arg0, %arg2, %arg1 : i32, i32, i32
  }
}

</mosaic_0001>

<llo_original>
// kernel: tpu_custom_call.1
$region0: #{tpu_custom_call.1}
  #allocation0 [shape = 'u32[]', space=smem, size = 0x4, offset = 0x4, fixed_abs, tag = 'smem constant byte address 0x4 - core index']
  #allocation1 [shape = 'u32[144,128]{1,0:T(1,128)}', space=vmem, size = 0x12000, scoped, tag = 'internal scratch']
  #allocation2 [shape = 'f32[1,32]{1,0:T(1,128)}', space=vmem, size = 0x200, scoped, tag = 'scratch operand']
  %s0 = inlined_call_operand.hbm [shape: f32[2,8,32], index: 0, kind: input, shape index: {}]
  %s1 = inlined_call_operand.hbm [shape: f32[2,8,32], index: 1, kind: output, shape index: {}]
  %s2 = sld [smem:[#allocation0]]
  $region45: #{tpu_custom_call.1} parent=0
    _
  %s4 = ssub.s32 1, %s2
  %s5 = scalar_select 0, %s4, %s2
  $region1: #{tpu_custom_call.1} parent=0
    #allocation3 [shape = 'u8[8192]{0}', space=vmem, size = 0x2000, scoped, tag = 'input window, operand 0']
    #allocation4 [shape = 's32[2]{0}', space=sflag, size = 0x8, scoped, tag = 'scoped memory for tpu_custom_call.1']
    #allocation5 [shape = 's32[2]{0}', space=sflag, size = 0x8, scoped, tag = 'scoped memory for tpu_custom_call.1']
    #allocation6 [shape = 'u8[8192]{0}', space=vmem, size = 0x2000, scoped, tag = 'output window, operand 0']
    %6 = vsyncpa [#allocation4], 0
    %s7 = scalar_lea.sflag [#allocation4], 1
    %8 = vsyncpa %s7, 0
    %9 = vsyncpa [#allocation5], 0
    %s10 = scalar_lea.sflag [#allocation5], 1
    %11 = vsyncpa %s10, 0
    loop: start=0, step=1, limit=4
    $region2: #{tpu_custom_call.1} parent=1 // loop_pre_header
      _
    $region3: #{tpu_custom_call.1} parent=1 // loop_header
      %s13 = sphi 0, %s17
      %p14 = scmp.ge.s32.totalorder %s13, 4
      %s20 = sphi 0, %s39
      %s21 = sphi 0, %s35
      %s22 = sphi 0, %s31
      %s23 = sphi 0, %s20
      %s24 = sphi 0, %s21
      %s25 = sphi 0, %s22
      %s26 = sphi 0, %s23
      %s27 = sphi 0, %s24
      %s28 = sphi 0, %s25
      %s46 = sphi 0, %s48
      %s49 = sphi 0, %s46
      %s50 = sphi 0, %s49
      %s66 = sphi 0, %s50
      %s76 = sphi 0, %s78
      %s79 = sphi 0, %s76
      %s80 = sphi 0, %s79
      %s96 = sphi 0, %s80
    $region4: #{tpu_custom_call.1} parent=1 // loop_header_branch
      %16 = sbr.rel (%p14) target = $region8
    $region5: #{tpu_custom_call.1} parent=1 // loop_body
      %s18 = ssub.s32 %s13, 1
      %s19 = ssub.s32 %s13, 2
      %s29 = sadd.s32 1, %s22
      %p30 = scmp.ge.s32.totalorder %s29, 1
      %s31 = scalar_select %p30, 0, %s29
      %s32 = sadd.s32 1, %s21
      %s33 = scalar_select %p30, %s32, %s21
      %p34 = scmp.ge.s32.totalorder %s33, 1
      %s35 = scalar_select %p34, 0, %s33
      %s36 = sadd.s32 1, %s20
      %s37 = scalar_select %p34, %s36, %s20
      %p38 = scmp.ge.s32.totalorder %s37, 2
      %s39 = scalar_select %p38, 0, %s37
      %s40 = ssub.s32 %s20, %s39
      %s41 = ssub.s32 %s22, %s31
      %s42 = sor.u32 %s40, %s41
      %s43 = ssub.s32 %s21, %s35
      %s44 = sor.u32 %s42, %s43
      %p45 = scmp.eq.s32.totalorder %s44, 0
      %s47 = sadd.s32 %s46, 1
      %s48 = scalar_select %p45, %s46, %s47
      %p51 = pneg %p45
      %p52 = scmp.eq.s32.totalorder %s13, 1
      %p53 = por %p51, %p52
      %p54 = scmp.ne.s32.totalorder %s46, %s49
      %p55 = scmp.eq.s32.totalorder %s13, 0
      %p56 = por %p54, %p55
      %p57 = scmp.ne.s32.totalorder %s46, %s49
      %p58 = scmp.eq.s32.totalorder %s18, 1
      %p59 = por %p57, %p58
      %p60 = scmp.ne.s32.totalorder %s49, %s50
      %p61 = scmp.eq.s32.totalorder %s18, 0
      %p62 = por %p60, %p61
      %p63 = scmp.ne.s32.totalorder %s49, %s50
      %p64 = scmp.eq.s32.totalorder %s19, 1
      %p65 = por %p63, %p64
      %p67 = scmp.ne.s32.totalorder %s50, %s66
      %p68 = scmp.eq.s32.totalorder %s19, 0
      %p69 = por %p67, %p68
      %s70 = ssub.s32 %s20, %s39
      %s71 = ssub.s32 %s22, %s31
      %s72 = sor.u32 %s70, %s71
      %s73 = ssub.s32 %s21, %s35
      %s74 = sor.u32 %s72, %s73
      %p75 = scmp.eq.s32.totalorder %s74, 0
      %s77 = sadd.s32 %s76, 1
      %s78 = scalar_select %p75, %s76, %s77
      %p81 = pneg %p75
      %p82 = scmp.eq.s32.totalorder %s13, 1
      %p83 = por %p81, %p82
      %p84 = scmp.ne.s32.totalorder %s76, %s79
      %p85 = scmp.eq.s32.totalorder %s13, 0
      %p86 = por %p84, %p85
      %p87 = scmp.ne.s32.totalorder %s76, %s79
      %p88 = scmp.eq.s32.totalorder %s18, 1
      %p89 = por %p87, %p88
      %p90 = scmp.ne.s32.totalorder %s79, %s80
      %p91 = scmp.eq.s32.totalorder %s18, 0
      %p92 = por %p90, %p91
      %p93 = scmp.ne.s32.totalorder %s79, %s80
      %p94 = scmp.eq.s32.totalorder %s19, 1
      %p95 = por %p93, %p94
      %p97 = scmp.ne.s32.totalorder %s80, %s96
      %p98 = scmp.eq.s32.totalorder %s19, 0
      %p99 = por %p97, %p98
      %p100 = scmp.le.s32.totalorder 1, %s13
      %p101 = scmp.lt.s32.totalorder %s13, 3
      %p102 = pnand %p100, %p101
      %p103 = pneg %p102
      // Predicated region
      $region9: #{tpu_custom_call.1} parent=5 // pred_check
        _
      $region10: #{tpu_custom_call.1} parent=5 // pred_check_branch
        %105 = sbr.rel (%p102) target = $region12
      $region11: #{tpu_custom_call.1} parent=5 // pred_region
        %s106 = ssub.s32 %s13, 1
      $region12: #{tpu_custom_call.1} parent=5 // pred_fallthru
        _
      %p107 = scmp.lt.s32.totalorder %s13, 2
      // Predicated region
      $region13: #{tpu_custom_call.1} parent=5 // pred_check
        %p108 = pneg %p107
      $region14: #{tpu_custom_call.1} parent=5 // pred_check_branch
        %110 = sbr.rel (%p108) target = $region16
      $region15: #{tpu_custom_call.1} parent=5 // pred_region
        // Predicated region
        $region17: #{tpu_custom_call.1} parent=15 // pred_check
          %p111 = pneg %p56
        $region18: #{tpu_custom_call.1} parent=15 // pred_check_branch
          %113 = sbr.rel (%p111) target = $region20
        $region19: #{tpu_custom_call.1} parent=15 // pred_region
          %s114 = sand.u32 %s46, 1
          %s115 = scalar_lea.sflag [#allocation4], %s114
          %s116 = sand.u32 %s46, 1
          %s117 = smul.addr %s116, 8
          %s118 = scalar_lea.vmem [#allocation3], %s117
          %s120 = ssub.s32 128, 128
          %121 = vsyncadd %s115, %s120
          %s122 = sadd.s32 %s21, %s22
          %s123 = sadd.s32 %s122, %s20
          %s124 = smul.addr %s123, 128
          %s125 = scalar_lea.hbm %s0, %s124
          %s127 = sshll.u32 %s118, 4
          %s128 = int_to_ptr.vmem [resolvable:$true] %s127
          %130 = dma.hbm_to_vmem [thread:$0]  %s125, 128, %s128, %s115
        $region20: #{tpu_custom_call.1} parent=15 // pred_fallthru
          _
      $region16: #{tpu_custom_call.1} parent=5 // pred_fallthru
        _
      %p131 = scmp.le.s32.totalorder 1, %s13
      %p132 = scmp.lt.s32.totalorder %s13, 3
      %p133 = pnand %p131, %p132
      %p134 = pneg %p133
      // Predicated region
      $region21: #{tpu_custom_call.1} parent=5 // pred_check
        _
      $region22: #{tpu_custom_call.1} parent=5 // pred_check_branch
        %136 = sbr.rel (%p133) target = $region24
      $region23: #{tpu_custom_call.1} parent=5 // pred_region
        %s137 = ssub.s32 %s13, 1
        %s138 = sand.u32 %s49, 1
        %s139 = scalar_lea.sflag [#allocation4], %s138
        %s140 = sand.u32 %s49, 1
        %s141 = smul.addr %s140, 8
        %s142 = scalar_lea.vmem [#allocation3], %s141
        // Predicated region
        $region25: #{tpu_custom_call.1} parent=23 // pred_check
          %p143 = pneg %p62
        $region26: #{tpu_custom_call.1} parent=23 // pred_check_branch
          %145 = sbr.rel (%p143) target = $region28
        $region27: #{tpu_custom_call.1} parent=23 // pred_region
          %146 = dma.done %s139, 128
        $region28: #{tpu_custom_call.1} parent=23 // pred_fallthru
          _
        %s147 = sand.u32 %s49, 1
        %s148 = scalar_lea.sflag [#allocation4], %s147
        %s149 = sand.u32 %s49, 1
        %s150 = smul.addr %s149, 8
        %s151 = scalar_lea.vmem [#allocation3], %s150
        %p152 = pneg %p62
        %p153 = pneg %p59
        %p154 = pneg %p92
        %p155 = pneg %p89
        %s156 = sand.u32 %s79, 1
        %s157 = scalar_lea.sflag [#allocation5], %s156
        %s158 = sand.u32 %s79, 1
        %s159 = smul.addr %s158, 8
        %s160 = scalar_lea.vmem [#allocation6], %s159
        %v161 = vld [vmem:[%s142] sm:$0xff]
        %p162 = scmp.eq.s32.totalorder %s25, 0
        // Predicated region
        $region29: #{tpu_custom_call.1} parent=23 // pred_check
          %p163 = pneg %p162
        $region30: #{tpu_custom_call.1} parent=23 // pred_check_branch
          %165 = sbr.rel (%p163) target = $region32
        $region31: #{tpu_custom_call.1} parent=23 // pred_region
          %vm166 = vcmask 253952
          %167 = vst.msk [vmem:[#allocation2] sm:$0x1] %vm166, %v161
        $region32: #{tpu_custom_call.1} parent=23 // pred_fallthru
          _
        %v168 = vrot.slane %v161, 7
        %v169 = vlaneseq
        %v170 = vshrl.u32 %v169, 7
        %vm171 = vcmp.eq.s32.totalorder %v170, 0
        %v172 = vld [vmem:[#allocation2] sm:$0x1]
        %v174 = vlaneseq
        %v175 = vshrl.u32 %v174, 7
        %v176 = vsub.s32 0, %v175
        %v177 = vrot.slane %v172, %v176
        %v179 = vsel %vm171, %v177, %v168
        %v180 = vadd.f32 %v179, 1e-08
        %v181 = vrcp.pop %v180
        %v182 = vmul.f32 %v161, %v181
        %vm183 = vcmask 261120
        %184 = vst.msk [vmem:[%s160] sm:$0xff] %vm183, %v182
        %vm185 = vcmask 261127
        %186 = vst.msk [vmem:[#allocation2 - $0x7] sm:$0x80] %vm185, %v161
        %s187 = sand.u32 %s79, 1
        %s188 = scalar_lea.sflag [#allocation5], %s187
        %s189 = sand.u32 %s79, 1
        %s190 = smul.addr %s189, 8
        %s191 = scalar_lea.vmem [#allocation6], %s190
        // Predicated region
        $region33: #{tpu_custom_call.1} parent=23 // pred_check
          %p192 = pneg %p89
        $region34: #{tpu_custom_call.1} parent=23 // pred_check_branch
          %194 = sbr.rel (%p192) target = $region36
        $region35: #{tpu_custom_call.1} parent=23 // pred_region
          %s196 = ssub.s32 128, 128
          %197 = vsyncadd %s188, %s196
          %s198 = sadd.s32 %s24, %s25
          %s199 = sadd.s32 %s198, %s23
          %s200 = smul.addr %s199, 128
          %s201 = scalar_lea.hbm %s1, %s200
          %s203 = sshll.u32 %s191, 4
          %s204 = int_to_ptr.vmem [resolvable:$true] %s203
          %206 = dma.vmem_to_hbm [thread:$0]  %s204, 128, %s201, %s188
        $region36: #{tpu_custom_call.1} parent=23 // pred_fallthru
          _
      $region24: #{tpu_custom_call.1} parent=5 // pred_fallthru
        _
      %p207 = scmp.le.s32.totalorder 2, %s13
      // Predicated region
      $region37: #{tpu_custom_call.1} parent=5 // pred_check
        %p208 = pneg %p207
      $region38: #{tpu_custom_call.1} parent=5 // pred_check_branch
        %210 = sbr.rel (%p208) target = $region40
      $region39: #{tpu_custom_call.1} parent=5 // pred_region
        %s211 = ssub.s32 %s13, 2
        // Predicated region
        $region41: #{tpu_custom_call.1} parent=39 // pred_check
          %p212 = pneg %p95
        $region42: #{tpu_custom_call.1} parent=39 // pred_check_branch
          %214 = sbr.rel (%p212) target = $region44
        $region43: #{tpu_custom_call.1} parent=39 // pred_region
          %s215 = sand.u32 %s80, 1
          %s216 = scalar_lea.sflag [#allocation5], %s215
          %s217 = sand.u32 %s80, 1
          %s218 = smul.addr %s217, 8
          %s219 = scalar_lea.vmem [#allocation6], %s218
          %220 = dma.done %s216, 128
        $region44: #{tpu_custom_call.1} parent=39 // pred_fallthru
          _
      $region40: #{tpu_custom_call.1} parent=5 // pred_fallthru
        _
    $region6: #{tpu_custom_call.1} parent=1 // loop_footer
      %s17 = sadd.s32 1, %s13
    $region7: #{tpu_custom_call.1} parent=1 // loop_footer_branch
      %12 = sbr.rel target = $region3
    $region8: #{tpu_custom_call.1} parent=1 // loop_exit
      _
    %221 = vsyncpa [#allocation4], 1
    %s222 = scalar_lea.sflag [#allocation4], 1
    %223 = vsyncpa %s222, 1
    %224 = vsyncpa [#allocation5], 1
    %s225 = scalar_lea.sflag [#allocation5], 1
    %226 = vsyncpa %s225, 1

</llo_original>
